<compile_context>
chip_gen: v7x
topology: tpu7x:2x2x1
jax: 0.10.0
libtpu: 0.0.40
codegen_flags: <defaults>
</compile_context>

<pallas_src>
import functools

import numpy as np
import jax
import jax.numpy as jnp
from jax import lax
from jax.experimental import pallas as pl
from jax.experimental.pallas import tpu as pltpu


def _up_shift_matrix(n_in, k):
    """(2*n_in, n_in) 0/1 matrix M with (M @ v)[p] = v_up[p + k - 1], where
    v_up is the nearest-2x upsample of v and indices outside [0, 2*n_in) are
    the conv's zero padding (at most one nonzero per row -> exact in bf16)."""
    n_out = 2 * n_in
    m = np.zeros((n_out, n_in), np.float32)
    for p in range(n_out):
        r = p + k - 1
        if 0 <= r < n_out:
            m[p, r // 2] = 1.0
    return m


def _upsample_conv_kernel(x_ref, a_ref, btw_ref, brow_ref, o_ref, *, Ho):
    """One batch element per grid step.

    x_ref   : (1, H, C*W)        VMEM, input image, channels along lanes
    a_ref   : (3*Ho, H)          VMEM, row-side upsample+shift [A_kh stacked]
    btw_ref : (3, C*W, C*Wo)     VMEM, per-kh column-side upsample+shift with
                                 the 3x3 conv weights folded in
    brow_ref: (1, C*Wo)          VMEM, bias repeated along lanes (f32)
    o_ref   : (1, Ho, C*Wo)      VMEM, lane-dense output slab
    """
    x_cw = x_ref[0]                                           # (H, C*W)

    # Stage 1 (MXU, 1 push): row-side upsample + shift for all 3 kh taps.
    # Each A row has at most one 1 -> casting back to compute dtype is exact.
    r1 = jnp.dot(a_ref[...], x_cw,
                 preferred_element_type=jnp.float32)          # (3*Ho, C*W) f32
    r1 = r1.astype(x_cw.dtype)

    # Stage 2 (MXU, 3 pushes): column-side upsample + shift, channel mixing and
    # kh reduction in one weight-folded matmul per kh tap; f32 accumulation.
    y = jnp.dot(r1[0:Ho, :], btw_ref[0],
                preferred_element_type=jnp.float32)           # (Ho, C*Wo) f32
    y = y + jnp.dot(r1[Ho:2 * Ho, :], btw_ref[1],
                    preferred_element_type=jnp.float32)
    y = y + jnp.dot(r1[2 * Ho:3 * Ho, :], btw_ref[2],
                    preferred_element_type=jnp.float32)

    # Bias + single lane-dense store (last dim C*Wo = 128 here).
    o_ref[0] = (y + brow_ref[...]).astype(o_ref.dtype)


def upsample_forward(x_nchw, w_oihw, bias, *, compute_dtype=jnp.bfloat16):
    """Equivalent of Upsample.forward: nearest-2x upsample then Conv2d(3, pad=1)."""
    B, C, H, W = x_nchw.shape
    Ho, Wo = 2 * H, 2 * W
    cdt = compute_dtype

    # --- trace-time constants -------------------------------------------------
    # Row-side structural matrices, stacked over kh: (3*Ho, H), exact 0/1.
    a_stack = jnp.asarray(
        np.concatenate([_up_shift_matrix(H, kh) for kh in range(3)], axis=0),
        dtype=cdt)
    # Column-side structural matrices with the conv weights folded in:
    #   BtW[kh, ci*W + w', co*Wo + q] = sum_kw w[co,ci,kh,kw] * Bt_kw[w', q]
    bt_all = np.stack([_up_shift_matrix(W, kw).T for kw in range(3)])  # (3,W,Wo)
    btw = jnp.einsum('oihk,kab->hiaob',
                     w_oihw.astype(jnp.float32),
                     jnp.asarray(bt_all, dtype=jnp.float32),
                     precision=lax.Precision.HIGHEST)
    btw = btw.reshape(3, C * W, C * Wo).astype(cdt)
    # Bias broadcast along the lane-dense output layout: (1, C*Wo), f32.
    brow = jnp.repeat(bias.astype(jnp.float32), Wo)[None, :]

    # --- input layout plumbing (fuses with the bf16 cast in XLA) --------------
    # (B, C, H, W) -> (B, H, C*W): channels along lanes so the MXU contraction
    # of stage 2 runs over (ci, w') and the output comes out lane-dense.
    x_cw = x_nchw.transpose(0, 2, 1, 3).reshape(B, H, C * W).astype(cdt)

    kernel = functools.partial(_upsample_conv_kernel, Ho=Ho)

    # --- VMEM budget derived from actual block sizes (per perf review) --------
    def _nbytes(shape, dtype):
        return int(np.prod(shape)) * jnp.dtype(dtype).itemsize

    block_bytes = (_nbytes((1, H, C * W), cdt)
                   + _nbytes((3 * Ho, H), cdt)
                   + _nbytes((3, C * W, C * Wo), cdt)
                   + _nbytes((1, C * Wo), jnp.float32)
                   + _nbytes((1, Ho, C * Wo), x_nchw.dtype))
    # 2x for BlockSpec double-buffering + headroom for in-kernel intermediates.
    vmem_limit = int(max(8 * 1024 * 1024, 2 * block_bytes + 4 * 1024 * 1024))

    out_rows = pl.pallas_call(
        kernel,
        out_shape=jax.ShapeDtypeStruct((B, Ho, C * Wo), x_nchw.dtype),
        grid=(B,),
        in_specs=[
            pl.BlockSpec((1, H, C * W), lambda b: (b, 0, 0)),      # image
            pl.BlockSpec((3 * Ho, H), lambda b: (0, 0)),           # A_stack
            pl.BlockSpec((3, C * W, C * Wo), lambda b: (0, 0, 0)), # BtW (const)
            pl.BlockSpec((1, C * Wo), lambda b: (0, 0)),           # bias row
        ],
        out_specs=pl.BlockSpec((1, Ho, C * Wo), lambda b: (b, 0, 0)),
        compiler_params=pltpu.CompilerParams(
            dimension_semantics=("parallel",),
            vmem_limit_bytes=vmem_limit),
    )(x_cw, a_stack, btw, brow)

    # Output layout plumbing: (B, Ho, C*Wo) -> NCHW.  (For Wo >= 128 emit NCHW
    # directly from the kernel instead; the store is already lane-dense there.)
    return out_rows.reshape(B, Ho, C, Wo).transpose(0, 2, 1, 3)


def _reference(x_nchw, w_oihw, bias):
    """Pure-JAX reference matching F.interpolate(nearest, 2) + Conv2d(3, pad=1)."""
    up = jnp.repeat(jnp.repeat(x_nchw, 2, axis=2), 2, axis=3)
    y = lax.conv_general_dilated(
        up, w_oihw, window_strides=(1, 1), padding=((1, 1), (1, 1)),
        dimension_numbers=("NCHW", "OIHW", "NCHW"),
        precision=lax.Precision.HIGHEST)
    return y + bias[None, :, None, None]


if __name__ == "__main__":
    B, C, H, W = 2, 4, 16, 16

    key = jax.random.PRNGKey(0)
    kx, kwt, kb = jax.random.split(key, 3)

    # Deterministic synthetic parameters (PyTorch Conv2d-style uniform init).
    fan_in = C * 3 * 3
    bound = 1.0 / np.sqrt(fan_in)
    x = jax.random.normal(kx, (B, C, H, W), dtype=jnp.float32)
    w = jax.random.uniform(kwt, (C, C, 3, 3), dtype=jnp.float32,
                           minval=-bound, maxval=bound)          # OIHW
    b = jax.random.uniform(kb, (C,), dtype=jnp.float32,
                           minval=-bound, maxval=bound)

    fwd = jax.jit(upsample_forward, static_argnames=("compute_dtype",))

    ref = jax.block_until_ready(_reference(x, w, b))

    # 1) f32 path: exact semantics of the PyTorch module (tight check).
    out_f32 = jax.block_until_ready(fwd(x, w, b, compute_dtype=jnp.float32))
    assert out_f32.shape == (B, C, 2 * H, 2 * W), out_f32.shape
    np.testing.assert_allclose(np.asarray(out_f32), np.asarray(ref),
                               rtol=1e-4, atol=1e-4)

    # 2) default bf16 path: input and weight-folded matrices are bf16-quantized
    #    (f32 accumulation), so compare against the f32 reference at bf16-level
    #    tolerances.
    out_bf = jax.block_until_ready(fwd(x, w, b))
    np.testing.assert_allclose(np.asarray(out_bf), np.asarray(ref),
                               rtol=2e-2, atol=2e-2)

    print("KERNEL_OK")
</pallas_src>

<mosaic_0001>
module attributes {stable_mosaic.version = 11 : i64} {
  func.func @_upsample_conv_kernel(%arg0: i32, %arg1: memref<1x16x64xf32, #tpu.memory_space<vmem>>, %arg2: memref<96x16xf32, #tpu.memory_space<vmem>>, %arg3: memref<3x64x128xf32, #tpu.memory_space<vmem>>, %arg4: memref<1x128xf32, #tpu.memory_space<vmem>>, %arg5: memref<1x32x128xf32, #tpu.memory_space<vmem>>) attributes {dimension_semantics = [#tpu.dimension_semantics<parallel>], iteration_bounds = array<i64: 2>, scalar_prefetch = 0 : i64, scratch_operands = 0 : i64, tpu.core_type = #tpu.core_type<tc>, window_params = [{transform_indices = @transform_0, window_bounds = array<i64: 1, 16, 64>}, {pipeline_mode = #tpu.pipeline_mode<synchronous>, transform_indices = @transform_1, window_bounds = array<i64: 96, 16>}, {pipeline_mode = #tpu.pipeline_mode<synchronous>, transform_indices = @transform_2, window_bounds = array<i64: 3, 64, 128>}, {pipeline_mode = #tpu.pipeline_mode<synchronous>, transform_indices = @transform_3, window_bounds = array<i64: 1, 128>}, {transform_indices = @transform_4, window_bounds = array<i64: 1, 32, 128>}]} {
    %c0 = arith.constant 0 : index
    %c0_0 = arith.constant 0 : index
    %c0_1 = arith.constant 0 : index
    %0 = vector.load %arg1[%c0, %c0_0, %c0_1] : memref<1x16x64xf32, #tpu.memory_space<vmem>>, vector<1x16x64xf32>
    %1 = vector.shape_cast %0 : vector<1x16x64xf32> to vector<16x64xf32>
    %c0_2 = arith.constant 0 : index
    %c0_3 = arith.constant 0 : index
    %2 = vector.load %arg2[%c0_2, %c0_3] : memref<96x16xf32, #tpu.memory_space<vmem>>, vector<96x16xf32>
    %cst = arith.constant dense<0.000000e+00> : vector<96x64xf32>
    %3 = tpu.matmul %2, %1, %cst {dimension_numbers = #tpu.dot_dimension_numbers<[1], [0], [0], [1], [0, 0, 1, 1], [], []>} : vector<96x16xf32>, vector<16x64xf32>, vector<96x64xf32> -> vector<96x64xf32>
    %4 = vector.extract_strided_slice %3 {offsets = [0, 0], sizes = [32, 64], strides = [1, 1]} : vector<96x64xf32> to vector<32x64xf32>
    %c0_4 = arith.constant 0 : index
    %c0_5 = arith.constant 0 : index
    %c0_6 = arith.constant 0 : index
    %5 = vector.load %arg3[%c0_4, %c0_5, %c0_6] : memref<3x64x128xf32, #tpu.memory_space<vmem>>, vector<1x64x128xf32>
    %6 = vector.shape_cast %5 : vector<1x64x128xf32> to vector<64x128xf32>
    %cst_7 = arith.constant dense<0.000000e+00> : vector<32x128xf32>
    %7 = tpu.matmul %4, %6, %cst_7 {dimension_numbers = #tpu.dot_dimension_numbers<[1], [0], [0], [1], [0, 0, 1, 1], [], []>} : vector<32x64xf32>, vector<64x128xf32>, vector<32x128xf32> -> vector<32x128xf32>
    %8 = vector.extract_strided_slice %3 {offsets = [32, 0], sizes = [32, 64], strides = [1, 1]} : vector<96x64xf32> to vector<32x64xf32>
    %c1 = arith.constant 1 : index
    %c0_8 = arith.constant 0 : index
    %c0_9 = arith.constant 0 : index
    %9 = vector.load %arg3[%c1, %c0_8, %c0_9] : memref<3x64x128xf32, #tpu.memory_space<vmem>>, vector<1x64x128xf32>
    %10 = vector.shape_cast %9 : vector<1x64x128xf32> to vector<64x128xf32>
    %cst_10 = arith.constant dense<0.000000e+00> : vector<32x128xf32>
    %11 = tpu.matmul %8, %10, %cst_10 {dimension_numbers = #tpu.dot_dimension_numbers<[1], [0], [0], [1], [0, 0, 1, 1], [], []>} : vector<32x64xf32>, vector<64x128xf32>, vector<32x128xf32> -> vector<32x128xf32>
    %12 = arith.addf %7, %11 : vector<32x128xf32>
    %13 = vector.extract_strided_slice %3 {offsets = [64, 0], sizes = [32, 64], strides = [1, 1]} : vector<96x64xf32> to vector<32x64xf32>
    %c2 = arith.constant 2 : index
    %c0_11 = arith.constant 0 : index
    %c0_12 = arith.constant 0 : index
    %14 = vector.load %arg3[%c2, %c0_11, %c0_12] : memref<3x64x128xf32, #tpu.memory_space<vmem>>, vector<1x64x128xf32>
    %15 = vector.shape_cast %14 : vector<1x64x128xf32> to vector<64x128xf32>
    %cst_13 = arith.constant dense<0.000000e+00> : vector<32x128xf32>
    %16 = tpu.matmul %13, %15, %cst_13 {dimension_numbers = #tpu.dot_dimension_numbers<[1], [0], [0], [1], [0, 0, 1, 1], [], []>} : vector<32x64xf32>, vector<64x128xf32>, vector<32x128xf32> -> vector<32x128xf32>
    %17 = arith.addf %12, %16 : vector<32x128xf32>
    %c0_14 = arith.constant 0 : index
    %c0_15 = arith.constant 0 : index
    %18 = vector.load %arg4[%c0_14, %c0_15] : memref<1x128xf32, #tpu.memory_space<vmem>>, vector<1x128xf32>
    %19 = vector.broadcast %18 : vector<1x128xf32> to vector<32x128xf32>
    %20 = arith.addf %17, %19 : vector<32x128xf32>
    %c0_16 = arith.constant 0 : index
    %c0_17 = arith.constant 0 : index
    %c0_18 = arith.constant 0 : index
    %21 = vector.load %arg5[%c0_16, %c0_17, %c0_18] : memref<1x32x128xf32, #tpu.memory_space<vmem>>, vector<1x32x128xf32>
    %22 = vector.shape_cast %21 : vector<1x32x128xf32> to vector<32x128xf32>
    %23 = vector.shape_cast %20 : vector<32x128xf32> to vector<1x32x128xf32>
    tpu.vector_store %arg5[%c0_16, %c0_17, %c0_18], %23 {strides = array<i32>} : memref<1x32x128xf32, #tpu.memory_space<vmem>>, vector<1x32x128xf32>,
    return
  }
  func.func @transform_0(%arg0: i32) -> (i32, i32, i32) {
    %c0_i32 = arith.constant 0 : i32
    %c0_i32_0 = arith.constant 0 : i32
    %c0_i32_1 = arith.constant 0 : i32
    return %arg0, %c0_i32, %c0_i32_0 : i32, i32, i32
  }
  func.func @transform_1(%arg0: i32) -> (i32, i32) {
    %c0_i32 = arith.constant 0 : i32
    %c0_i32_0 = arith.constant 0 : i32
    %c0_i32_1 = arith.constant 0 : i32
    return %c0_i32, %c0_i32_0 : i32, i32
  }
  func.func @transform_2(%arg0: i32) -> (i32, i32, i32) {
    %c0_i32 = arith.constant 0 : i32
    %c0_i32_0 = arith.constant 0 : i32
    %c0_i32_1 = arith.constant 0 : i32
    %c0_i32_2 = arith.constant 0 : i32
    return %c0_i32, %c0_i32_0, %c0_i32_1 : i32, i32, i32
  }
  func.func @transform_3(%arg0: i32) -> (i32, i32) {
    %c0_i32 = arith.constant 0 : i32
    %c0_i32_0 = arith.constant 0 : i32
    %c0_i32_1 = arith.constant 0 : i32
    return %c0_i32, %c0_i32_0 : i32, i32
  }
  func.func @transform_4(%arg0: i32) -> (i32, i32, i32) {
    %c0_i32 = arith.constant 0 : i32
    %c0_i32_0 = arith.constant 0 : i32
    %c0_i32_1 = arith.constant 0 : i32
    return %arg0, %c0_i32, %c0_i32_0 : i32, i32, i32
  }
}

</mosaic_0001>

<llo_original>
// kernel: upsample_forward.1
$region0: #{upsample_forward.1}
  #allocation0 [shape = 'u32[]', space=smem, size = 0x4, offset = 0x4, fixed_abs, tag = 'smem constant byte address 0x4 - core index']
  #allocation1 [shape = 'u32[144,128]{1,0:T(1,128)}', space=vmem, size = 0x12000, scoped, tag = 'internal scratch']
  %s0 = inlined_call_operand.vmem [shape: f32[2,16,64], index: 0, kind: input, shape index: {}]
  %s1 = inlined_call_operand.vmem [shape: f32[96,16], index: 1, kind: input, shape index: {}]
  %s2 = inlined_call_operand.vmem [shape: f32[3,64,128], index: 2, kind: input, shape index: {}]
  %s3 = inlined_call_operand.vmem [shape: f32[1,128], index: 3, kind: input, shape index: {}]
  %s4 = inlined_call_operand.vmem [shape: f32[2,32,128], index: 4, kind: output, shape index: {}]
  %s5 = sld [smem:[#allocation0]]
  $region49: #{upsample_forward.1} parent=0
    _
  %s7 = ssub.s32 1, %s5
  %s8 = scalar_select 0, %s7, %s5
  loop: start=0, step=1, limit=4
  $region2: #{upsample_forward.1} parent=0 // loop_pre_header
    _
  $region3: #{upsample_forward.1} parent=0 // loop_header
    %s10 = sphi 0, %s14
    %p11 = scmp.ge.s32.totalorder %s10, 4
    %s20 = sphi 0, %s22
    %s23 = sphi 0, %s20
    %s24 = sphi 0, %s23
    %s40 = sphi 0, %s24
    %s44 = sphi 0, %s44
    %s46 = sphi 0, %s44
    %s47 = sphi 0, %s46
    %s61 = sphi 0, %s47
    %s65 = sphi 0, %s65
    %s67 = sphi 0, %s65
    %s68 = sphi 0, %s67
    %s82 = sphi 0, %s68
    %s86 = sphi 0, %s86
    %s88 = sphi 0, %s86
    %s89 = sphi 0, %s88
    %s103 = sphi 0, %s89
    %s109 = sphi 0, %s111
    %s112 = sphi 0, %s109
    %s113 = sphi 0, %s112
    %s129 = sphi 0, %s113
  $region4: #{upsample_forward.1} parent=0 // loop_header_branch
    %13 = sbr.rel (%p11) target = $region8
  $region5: #{upsample_forward.1} parent=0 // loop_body
    %s15 = ssub.s32 %s10, 1
    %s16 = ssub.s32 %s10, 2
    %s17 = sadd.s32 %s10, 1
    %s18 = ssub.s32 %s10, %s17
    %p19 = scmp.eq.s32.totalorder %s18, 0
    %s21 = sadd.s32 %s20, 1
    %s22 = scalar_select %p19, %s20, %s21
    %p25 = pneg %p19
    %p26 = scmp.eq.s32.totalorder %s10, 1
    %p27 = por %p25, %p26
    %p28 = scmp.ne.s32.totalorder %s20, %s23
    %p29 = scmp.eq.s32.totalorder %s10, 0
    %p30 = por %p28, %p29
    %p31 = scmp.ne.s32.totalorder %s20, %s23
    %p32 = scmp.eq.s32.totalorder %s15, 1
    %p33 = por %p31, %p32
    %p34 = scmp.ne.s32.totalorder %s23, %s24
    %p35 = scmp.eq.s32.totalorder %s15, 0
    %p36 = por %p34, %p35
    %p37 = scmp.ne.s32.totalorder %s23, %s24
    %p38 = scmp.eq.s32.totalorder %s16, 1
    %p39 = por %p37, %p38
    %p41 = scmp.ne.s32.totalorder %s24, %s40
    %p42 = scmp.eq.s32.totalorder %s16, 0
    %p43 = por %p41, %p42
    %s45 = sadd.s32 %s44, 1
    %p48 = scmp.eq.s32.totalorder %s10, 1
    %p49 = scmp.ne.s32.totalorder %s44, %s46
    %p50 = scmp.eq.s32.totalorder %s10, 0
    %p51 = por %p49, %p50
    %p52 = scmp.ne.s32.totalorder %s44, %s46
    %p53 = scmp.eq.s32.totalorder %s15, 1
    %p54 = por %p52, %p53
    %p55 = scmp.ne.s32.totalorder %s46, %s47
    %p56 = scmp.eq.s32.totalorder %s15, 0
    %p57 = por %p55, %p56
    %p58 = scmp.ne.s32.totalorder %s46, %s47
    %p59 = scmp.eq.s32.totalorder %s16, 1
    %p60 = por %p58, %p59
    %p62 = scmp.ne.s32.totalorder %s47, %s61
    %p63 = scmp.eq.s32.totalorder %s16, 0
    %p64 = por %p62, %p63
    %s66 = sadd.s32 %s65, 1
    %p69 = scmp.eq.s32.totalorder %s10, 1
    %p70 = scmp.ne.s32.totalorder %s65, %s67
    %p71 = scmp.eq.s32.totalorder %s10, 0
    %p72 = por %p70, %p71
    %p73 = scmp.ne.s32.totalorder %s65, %s67
    %p74 = scmp.eq.s32.totalorder %s15, 1
    %p75 = por %p73, %p74
    %p76 = scmp.ne.s32.totalorder %s67, %s68
    %p77 = scmp.eq.s32.totalorder %s15, 0
    %p78 = por %p76, %p77
    %p79 = scmp.ne.s32.totalorder %s67, %s68
    %p80 = scmp.eq.s32.totalorder %s16, 1
    %p81 = por %p79, %p80
    %p83 = scmp.ne.s32.totalorder %s68, %s82
    %p84 = scmp.eq.s32.totalorder %s16, 0
    %p85 = por %p83, %p84
    %s87 = sadd.s32 %s86, 1
    %p90 = scmp.eq.s32.totalorder %s10, 1
    %p91 = scmp.ne.s32.totalorder %s86, %s88
    %p92 = scmp.eq.s32.totalorder %s10, 0
    %p93 = por %p91, %p92
    %p94 = scmp.ne.s32.totalorder %s86, %s88
    %p95 = scmp.eq.s32.totalorder %s15, 1
    %p96 = por %p94, %p95
    %p97 = scmp.ne.s32.totalorder %s88, %s89
    %p98 = scmp.eq.s32.totalorder %s15, 0
    %p99 = por %p97, %p98
    %p100 = scmp.ne.s32.totalorder %s88, %s89
    %p101 = scmp.eq.s32.totalorder %s16, 1
    %p102 = por %p100, %p101
    %p104 = scmp.ne.s32.totalorder %s89, %s103
    %p105 = scmp.eq.s32.totalorder %s16, 0
    %p106 = por %p104, %p105
    %s107 = ssub.s32 %s10, %s17
    %p108 = scmp.eq.s32.totalorder %s107, 0
    %s110 = sadd.s32 %s109, 1
    %s111 = scalar_select %p108, %s109, %s110
    %p114 = pneg %p108
    %p115 = scmp.eq.s32.totalorder %s10, 1
    %p116 = por %p114, %p115
    %p117 = scmp.ne.s32.totalorder %s109, %s112
    %p118 = scmp.eq.s32.totalorder %s10, 0
    %p119 = por %p117, %p118
    %p120 = scmp.ne.s32.totalorder %s109, %s112
    %p121 = scmp.eq.s32.totalorder %s15, 1
    %p122 = por %p120, %p121
    %p123 = scmp.ne.s32.totalorder %s112, %s113
    %p124 = scmp.eq.s32.totalorder %s15, 0
    %p125 = por %p123, %p124
    %p126 = scmp.ne.s32.totalorder %s112, %s113
    %p127 = scmp.eq.s32.totalorder %s16, 1
    %p128 = por %p126, %p127
    %p130 = scmp.ne.s32.totalorder %s113, %s129
    %p131 = scmp.eq.s32.totalorder %s16, 0
    %p132 = por %p130, %p131
    %p133 = scmp.le.s32.totalorder 1, %s10
    %p134 = scmp.lt.s32.totalorder %s10, 3
    %p135 = pnand %p133, %p134
    %p136 = pneg %p135
    // Predicated region
    $region9: #{upsample_forward.1} parent=5 // pred_check
      _
    $region10: #{upsample_forward.1} parent=5 // pred_check_branch
      %138 = sbr.rel (%p135) target = $region12
    $region11: #{upsample_forward.1} parent=5 // pred_region
      %s139 = ssub.s32 %s10, 1
      // Predicated region
      $region13: #{upsample_forward.1} parent=11 // pred_check
        %p140 = pneg %p57
      $region14: #{upsample_forward.1} parent=11 // pred_check_branch
        %142 = sbr.rel (%p140) target = $region16
      $region15: #{upsample_forward.1} parent=11 // pred_region
        _
      $region16: #{upsample_forward.1} parent=11 // pred_fallthru
        _
      // Predicated region
      $region17: #{upsample_forward.1} parent=11 // pred_check
        %p143 = pneg %p78
      $region18: #{upsample_forward.1} parent=11 // pred_check_branch
        %145 = sbr.rel (%p143) target = $region20
      $region19: #{upsample_forward.1} parent=11 // pred_region
        _
      $region20: #{upsample_forward.1} parent=11 // pred_fallthru
        _
      // Predicated region
      $region21: #{upsample_forward.1} parent=11 // pred_check
        %p146 = pneg %p99
      $region22: #{upsample_forward.1} parent=11 // pred_check_branch
        %148 = sbr.rel (%p146) target = $region24
      $region23: #{upsample_forward.1} parent=11 // pred_region
        _
      $region24: #{upsample_forward.1} parent=11 // pred_fallthru
        _
    $region12: #{upsample_forward.1} parent=5 // pred_fallthru
      _
    %p149 = scmp.lt.s32.totalorder %s10, 2
    // Predicated region
    $region25: #{upsample_forward.1} parent=5 // pred_check
      %p150 = pneg %p149
    $region26: #{upsample_forward.1} parent=5 // pred_check_branch
      %152 = sbr.rel (%p150) target = $region28
    $region27: #{upsample_forward.1} parent=5 // pred_region
      // Predicated region
      $region29: #{upsample_forward.1} parent=27 // pred_check
        %p153 = pneg %p30
      $region30: #{upsample_forward.1} parent=27 // pred_check_branch
        %155 = sbr.rel (%p153) target = $region32
      $region31: #{upsample_forward.1} parent=27 // pred_region
        %p156 = scmp.lt.s32.totalorder %s10, 1
        %s157 = scalar_select %p156, %s10, 1
        %s158 = smul.addr %s157, 2
        %s159 = smul.addr %s158, 8
        %s160 = scalar_lea.vmem %s0, %s159
      $region32: #{upsample_forward.1} parent=27 // pred_fallthru
        _
    $region28: #{upsample_forward.1} parent=5 // pred_fallthru
      _
    %p161 = scmp.le.s32.totalorder 1, %s10
    %p162 = scmp.lt.s32.totalorder %s10, 3
    %p163 = pnand %p161, %p162
    %p164 = pneg %p163
    // Predicated region
    $region33: #{upsample_forward.1} parent=5 // pred_check
      _
    $region34: #{upsample_forward.1} parent=5 // pred_check_branch
      %166 = sbr.rel (%p163) target = $region36
    $region35: #{upsample_forward.1} parent=5 // pred_region
      %s167 = ssub.s32 %s10, 1
      %p168 = scmp.lt.s32.totalorder %s15, 1
      %s169 = scalar_select %p168, %s15, 1
      %s170 = smul.addr %s169, 2
      %s171 = smul.addr %s170, 8
      %s172 = scalar_lea.vmem %s0, %s171
      %p173 = pneg %p36
      %p174 = pneg %p33
      %p175 = pneg %p57
      %p176 = pneg %p54
      %p177 = pneg %p78
      %p178 = pneg %p75
      %p179 = pneg %p99
      %p180 = pneg %p96
      %p181 = pneg %p125
      %p182 = pneg %p122
      %p183 = scmp.lt.s32.totalorder %s15, 1
      %s184 = scalar_select %p183, %s15, 1
      %s185 = smul.addr %s184, 4
      %s186 = smul.addr %s185, 8
      %s187 = scalar_lea.vmem %s4, %s186
      %p188 = scmp.lt.s32.totalorder %s15, 1
      %s189 = scalar_select %p188, %s15, 1
      %s190 = smul.addr %s189, 2
      %s191 = smul.addr %s190, 8
      %s192 = scalar_lea.vmem %s0, %s191
      %p193 = scmp.lt.s32.totalorder %s15, 1
      %s194 = scalar_select %p193, %s15, 1
      %s195 = smul.addr %s194, 4
      %s196 = smul.addr %s195, 8
      %s197 = scalar_lea.vmem %s4, %s196
      %v198 = vld [vmem:[%s192] sm:$0xff]
      %v199 = vld [vmem:[%s192 + $0x8] sm:$0xff]
      %v200 = vld [vmem:[%s1] sm:$0xff]
      %v201 = vld [vmem:[%s1 + $0x8] sm:$0xff]
      %v202 = vld [vmem:[%s1 + $0x10] sm:$0xff]
      %v203 = vld [vmem:[%s1 + $0x18] sm:$0xff]
      %v204 = vld [vmem:[%s1 + $0x20] sm:$0xff]
      %v205 = vld [vmem:[%s1 + $0x28] sm:$0xff]
      %v206 = vld [vmem:[%s1 + $0x30] sm:$0xff]
      %v207 = vld [vmem:[%s1 + $0x38] sm:$0xff]
      %v208 = vld [vmem:[%s1 + $0x40] sm:$0xff]
      %v209 = vld [vmem:[%s1 + $0x48] sm:$0xff]
      %v210 = vld [vmem:[%s1 + $0x50] sm:$0xff]
      %v211 = vld [vmem:[%s1 + $0x58] sm:$0xff]
      %vm212 = vcmask 130048
      %v214 = vsel %vm212, %v200, 0
      %v217 = vsel %vm212, %v201, 0
      %v220 = vsel %vm212, %v202, 0
      %v223 = vsel %vm212, %v203, 0
      %v226 = vsel %vm212, %v204, 0
      %v229 = vsel %vm212, %v205, 0
      %v232 = vsel %vm212, %v206, 0
      %v235 = vsel %vm212, %v207, 0
      %v238 = vsel %vm212, %v208, 0
      %v241 = vsel %vm212, %v209, 0
      %v244 = vsel %vm212, %v210, 0
      %v247 = vsel %vm212, %v211, 0
      %249 = vmatprep.subr.mxu0 0.0
      %250 = vmatpush1.msra.mxu0 %v198
      %251 = vmatprep.subr.mxu0 0.0
      %252 = vmatpush1.msra.mxu0 %v199
      %253 = vmatprep.subr.mxu0 0.0
      %254 = vmatpush1.msra.mxu0 0.0
      %255 = vmatprep.subr.mxu0 0.0
      %256 = vmatpush1.msra.mxu0 0.0
      %257 = vmatprep.subr.mxu0 0.0
      %258 = vmatpush1.msra.mxu0 0.0
      %259 = vmatprep.subr.mxu0 0.0
      %260 = vmatpush1.msra.mxu0 0.0
      %261 = vmatprep.subr.mxu0 0.0
      %262 = vmatpush1.msra.mxu0 0.0
      %263 = vmatprep.subr.mxu0 0.0
      %264 = vmatpush1.msra.mxu0 0.0
      %265 = vmatprep.subr.mxu0 0.0
      %266 = vmatpush1.msra.mxu0 0.0
      %267 = vmatprep.subr.mxu0 0.0
      %268 = vmatpush1.msra.mxu0 0.0
      %269 = vmatprep.subr.mxu0 0.0
      %270 = vmatpush1.msra.mxu0 0.0
      %271 = vmatprep.subr.mxu0 0.0
      %272 = vmatpush1.msra.mxu0 0.0
      %273 = vmatprep.subr.mxu0 0.0
      %274 = vmatpush1.msra.mxu0 0.0
      %275 = vmatprep.subr.mxu0 0.0
      %276 = vmatpush1.msra.mxu0 0.0
      %277 = vmatprep.subr.mxu0 0.0
      %278 = vmatpush1.msra.mxu0 0.0
      %279 = vmatprep.subr.mxu0 0.0
      %280 = vmatpush1.msra.mxu0 0.0
      %281 = vmatprep.subr.mxu0 0.0
      %282 = vmatpush1.msra.mxu0 0.0
      %283 = vmatprep.subr.mxu0 0.0
      %284 = vmatpush1.msra.mxu0 0.0
      %285 = vmatprep.subr.mxu0 0.0
      %286 = vmatpush1.msra.mxu0 0.0
      %287 = vmatprep.subr.mxu0 0.0
      %288 = vmatpush1.msra.mxu0 0.0
      %289 = vmatprep.subr.mxu0 0.0
      %290 = vmatpush1.msra.mxu0 0.0
      %291 = vmatprep.subr.mxu0 0.0
      %292 = vmatpush1.msra.mxu0 0.0
      %293 = vmatprep.subr.mxu0 0.0
      %294 = vmatpush1.msra.mxu0 0.0
      %295 = vmatprep.subr.mxu0 0.0
      %296 = vmatpush1.msra.mxu0 0.0
      %297 = vmatprep.subr.mxu0 0.0
      %298 = vmatpush1.msra.mxu0 0.0
      %299 = vmatprep.subr.mxu0 0.0
      %300 = vmatpush1.msra.mxu0 0.0
      %301 = vmatprep.subr.mxu0 0.0
      %302 = vmatpush1.msra.mxu0 0.0
      %303 = vmatprep.subr.mxu0 0.0
      %304 = vmatpush1.msra.mxu0 0.0
      %305 = vmatprep.subr.mxu0 0.0
      %306 = vmatpush1.msra.mxu0 0.0
      %307 = vmatprep.subr.mxu0 0.0
      %308 = vmatpush1.msra.mxu0 0.0
      %309 = vmatprep.subr.mxu0 0.0
      %310 = vmatpush1.msra.mxu0 0.0
      %311 = vmatprep.subr.mxu0 0.0
      %312 = vmatpush1.msra.mxu0 0.0
      %313 = vmatprep.mubr.f32.mxu0 0.0
      %314 = vmatmul.mubr.f32.gmra.mrb[0].mxu0 %v214
      %v315 = vpop.f32.mrb[0].mxu0
      %v316 = vadd.f32 0.0, %v315
      %v317 = vpop.f32.mrb[0].mxu0
      %318 = vmatprep.mubr.f32.mxu0 0.0
      %319 = vmatmul.mubr.f32.gmra.mrb[0].mxu0 %v217
      %v320 = vpop.f32.mrb[0].mxu0
      %v321 = vadd.f32 0.0, %v320
      %v322 = vpop.f32.mrb[0].mxu0
      %323 = vmatprep.mubr.f32.mxu0 0.0
      %324 = vmatmul.mubr.f32.gmra.mrb[0].mxu0 %v220
      %v325 = vpop.f32.mrb[0].mxu0
      %v326 = vadd.f32 0.0, %v325
      %v327 = vpop.f32.mrb[0].mxu0
      %328 = vmatprep.mubr.f32.mxu0 0.0
      %329 = vmatmul.mubr.f32.gmra.mrb[0].mxu0 %v223
      %v330 = vpop.f32.mrb[0].mxu0
      %v331 = vadd.f32 0.0, %v330
      %v332 = vpop.f32.mrb[0].mxu0
      %333 = vmatprep.mubr.f32.mxu0 0.0
      %334 = vmatmul.mubr.f32.gmra.mrb[0].mxu0 %v226
      %v335 = vpop.f32.mrb[0].mxu0
      %v336 = vadd.f32 0.0, %v335
      %v337 = vpop.f32.mrb[0].mxu0
      %338 = vmatprep.mubr.f32.mxu0 0.0
      %339 = vmatmul.mubr.f32.gmra.mrb[0].mxu0 %v229
      %v340 = vpop.f32.mrb[0].mxu0
      %v341 = vadd.f32 0.0, %v340
      %v342 = vpop.f32.mrb[0].mxu0
      %343 = vmatprep.mubr.f32.mxu0 0.0
      %344 = vmatmul.mubr.f32.gmra.mrb[0].mxu0 %v232
      %v345 = vpop.f32.mrb[0].mxu0
      %v346 = vadd.f32 0.0, %v345
      %v347 = vpop.f32.mrb[0].mxu0
      %348 = vmatprep.mubr.f32.mxu0 0.0
      %349 = vmatmul.mubr.f32.gmra.mrb[0].mxu0 %v235
      %v350 = vpop.f32.mrb[0].mxu0
      %v351 = vadd.f32 0.0, %v350
      %v352 = vpop.f32.mrb[0].mxu0
      %353 = vmatprep.mubr.f32.mxu0 0.0
      %354 = vmatmul.mubr.f32.gmra.mrb[0].mxu0 %v238
      %v355 = vpop.f32.mrb[0].mxu0
      %v356 = vadd.f32 0.0, %v355
      %v357 = vpop.f32.mrb[0].mxu0
      %358 = vmatprep.mubr.f32.mxu0 0.0
      %359 = vmatmul.mubr.f32.gmra.mrb[0].mxu0 %v241
      %v360 = vpop.f32.mrb[0].mxu0
      %v361 = vadd.f32 0.0, %v360
      %v362 = vpop.f32.mrb[0].mxu0
      %363 = vmatprep.mubr.f32.mxu0 0.0
      %364 = vmatmul.mubr.f32.gmra.mrb[0].mxu0 %v244
      %v365 = vpop.f32.mrb[0].mxu0
      %v366 = vadd.f32 0.0, %v365
      %v367 = vpop.f32.mrb[0].mxu0
      %368 = vmatprep.mubr.f32.mxu0 0.0
      %369 = vmatmul.mubr.f32.gmra.mrb[0].mxu0 %v247
      %v370 = vpop.f32.mrb[0].mxu0
      %v371 = vadd.f32 0.0, %v370
      %v372 = vpop.f32.mrb[0].mxu0
      %373 = vdwg.mxu0
      %v374 = vld [vmem:[%s2] sm:$0xff]
      %v375 = vld [vmem:[%s2 + $0x8] sm:$0xff]
      %v376 = vld [vmem:[%s2 + $0x10] sm:$0xff]
      %v377 = vld [vmem:[%s2 + $0x18] sm:$0xff]
      %v378 = vld [vmem:[%s2 + $0x20] sm:$0xff]
      %v379 = vld [vmem:[%s2 + $0x28] sm:$0xff]
      %v380 = vld [vmem:[%s2 + $0x30] sm:$0xff]
      %v381 = vld [vmem:[%s2 + $0x38] sm:$0xff]
      %s382 = scalar_lea.vmem %s2, 64
      %v383 = vld [vmem:[%s382] sm:$0xff]
      %v384 = vld [vmem:[%s382 + $0x8] sm:$0xff]
      %v385 = vld [vmem:[%s382 + $0x10] sm:$0xff]
      %v386 = vld [vmem:[%s382 + $0x18] sm:$0xff]
      %v387 = vld [vmem:[%s382 + $0x20] sm:$0xff]
      %v388 = vld [vmem:[%s382 + $0x28] sm:$0xff]
      %v389 = vld [vmem:[%s382 + $0x30] sm:$0xff]
      %v390 = vld [vmem:[%s382 + $0x38] sm:$0xff]
      %vm391 = vcmask 523264
      %v393 = vsel %vm391, %v336, 0
      %v396 = vsel %vm391, %v341, 0
      %v399 = vsel %vm391, %v346, 0
      %v402 = vsel %vm391, %v351, 0
      %404 = vmatprep.subr.mxu0 0.0
      %405 = vmatpush1.msra.mxu0 %v383
      %406 = vmatprep.subr.mxu0 0.0
      %407 = vmatpush1.msra.mxu0 %v384
      %408 = vmatprep.subr.mxu0 0.0
      %409 = vmatpush1.msra.mxu0 %v385
      %410 = vmatprep.subr.mxu0 0.0
      %411 = vmatpush1.msra.mxu0 %v386
      %412 = vmatprep.subr.mxu0 0.0
      %413 = vmatpush1.msra.mxu0 %v387
      %414 = vmatprep.subr.mxu0 0.0
      %415 = vmatpush1.msra.mxu0 %v388
      %416 = vmatprep.subr.mxu0 0.0
      %417 = vmatpush1.msra.mxu0 %v389
      %418 = vmatprep.subr.mxu0 0.0
      %419 = vmatpush1.msra.mxu0 %v390
      %420 = vmatprep.subr.mxu0 0.0
      %421 = vmatpush1.msra.mxu0 0.0
      %422 = vmatprep.subr.mxu0 0.0
      %423 = vmatpush1.msra.mxu0 0.0
      %424 = vmatprep.subr.mxu0 0.0
      %425 = vmatpush1.msra.mxu0 0.0
      %426 = vmatprep.subr.mxu0 0.0
      %427 = vmatpush1.msra.mxu0 0.0
      %428 = vmatprep.subr.mxu0 0.0
      %429 = vmatpush1.msra.mxu0 0.0
      %430 = vmatprep.subr.mxu0 0.0
      %431 = vmatpush1.msra.mxu0 0.0
      %432 = vmatprep.subr.mxu0 0.0
      %433 = vmatpush1.msra.mxu0 0.0
      %434 = vmatprep.subr.mxu0 0.0
      %435 = vmatpush1.msra.mxu0 0.0
      %436 = vmatprep.subr.mxu0 0.0
      %437 = vmatpush1.msra.mxu0 0.0
      %438 = vmatprep.subr.mxu0 0.0
      %439 = vmatpush1.msra.mxu0 0.0
      %440 = vmatprep.subr.mxu0 0.0
      %441 = vmatpush1.msra.mxu0 0.0
      %442 = vmatprep.subr.mxu0 0.0
      %443 = vmatpush1.msra.mxu0 0.0
      %444 = vmatprep.subr.mxu0 0.0
      %445 = vmatpush1.msra.mxu0 0.0
      %446 = vmatprep.subr.mxu0 0.0
      %447 = vmatpush1.msra.mxu0 0.0
      %448 = vmatprep.subr.mxu0 0.0
      %449 = vmatpush1.msra.mxu0 0.0
      %450 = vmatprep.subr.mxu0 0.0
      %451 = vmatpush1.msra.mxu0 0.0
      %452 = vmatprep.subr.mxu0 0.0
      %453 = vmatpush1.msra.mxu0 0.0
      %454 = vmatprep.subr.mxu0 0.0
      %455 = vmatpush1.msra.mxu0 0.0
      %456 = vmatprep.subr.mxu0 0.0
      %457 = vmatpush1.msra.mxu0 0.0
      %458 = vmatprep.subr.mxu0 0.0
      %459 = vmatpush1.msra.mxu0 0.0
      %460 = vmatprep.subr.mxu0 0.0
      %461 = vmatpush1.msra.mxu0 0.0
      %462 = vmatprep.subr.mxu0 0.0
      %463 = vmatpush1.msra.mxu0 0.0
      %464 = vmatprep.subr.mxu0 0.0
      %465 = vmatpush1.msra.mxu0 0.0
      %466 = vmatprep.subr.mxu0 0.0
      %467 = vmatpush1.msra.mxu0 0.0
      %468 = vmatprep.mubr.f32.mxu0 0.0
      %469 = vmatmul.mubr.f32.gmra.mrb[0].mxu0 %v393
      %v470 = vpop.f32.mrb[0].mxu0
      %v471 = vadd.f32 0.0, %v470
      %v472 = vpop.f32.mrb[0].mxu0
      %473 = vmatprep.mubr.f32.mxu0 0.0
      %474 = vmatmul.mubr.f32.gmra.mrb[0].mxu0 %v396
      %v475 = vpop.f32.mrb[0].mxu0
      %v476 = vadd.f32 0.0, %v475
      %v477 = vpop.f32.mrb[0].mxu0
      %478 = vmatprep.mubr.f32.mxu0 0.0
      %479 = vmatmul.mubr.f32.gmra.mrb[0].mxu0 %v399
      %v480 = vpop.f32.mrb[0].mxu0
      %v481 = vadd.f32 0.0, %v480
      %v482 = vpop.f32.mrb[0].mxu0
      %483 = vmatprep.mubr.f32.mxu0 0.0
      %484 = vmatmul.mubr.f32.gmra.mrb[0].mxu0 %v402
      %v485 = vpop.f32.mrb[0].mxu0
      %v486 = vadd.f32 0.0, %v485
      %v487 = vpop.f32.mrb[0].mxu0
      %488 = vdwg.mxu0
      %v490 = vsel %vm391, %v316, 0
      %v493 = vsel %vm391, %v321, 0
      %v496 = vsel %vm391, %v326, 0
      %v499 = vsel %vm391, %v331, 0
      %501 = vmatprep.subr.mxu0 0.0
      %502 = vmatpush1.msra.mxu0 %v374
      %503 = vmatprep.subr.mxu0 0.0
      %504 = vmatpush1.msra.mxu0 %v375
      %505 = vmatprep.subr.mxu0 0.0
      %506 = vmatpush1.msra.mxu0 %v376
      %507 = vmatprep.subr.mxu0 0.0
      %508 = vmatpush1.msra.mxu0 %v377
      %509 = vmatprep.subr.mxu0 0.0
      %510 = vmatpush1.msra.mxu0 %v378
      %511 = vmatprep.subr.mxu0 0.0
      %512 = vmatpush1.msra.mxu0 %v379
      %513 = vmatprep.subr.mxu0 0.0
      %514 = vmatpush1.msra.mxu0 %v380
      %515 = vmatprep.subr.mxu0 0.0
      %516 = vmatpush1.msra.mxu0 %v381
      %517 = vmatprep.subr.mxu0 0.0
      %518 = vmatpush1.msra.mxu0 0.0
      %519 = vmatprep.subr.mxu0 0.0
      %520 = vmatpush1.msra.mxu0 0.0
      %521 = vmatprep.subr.mxu0 0.0
      %522 = vmatpush1.msra.mxu0 0.0
      %523 = vmatprep.subr.mxu0 0.0
      %524 = vmatpush1.msra.mxu0 0.0
      %525 = vmatprep.subr.mxu0 0.0
      %526 = vmatpush1.msra.mxu0 0.0
      %527 = vmatprep.subr.mxu0 0.0
      %528 = vmatpush1.msra.mxu0 0.0
      %529 = vmatprep.subr.mxu0 0.0
      %530 = vmatpush1.msra.mxu0 0.0
      %531 = vmatprep.subr.mxu0 0.0
      %532 = vmatpush1.msra.mxu0 0.0
      %533 = vmatprep.subr.mxu0 0.0
      %534 = vmatpush1.msra.mxu0 0.0
      %535 = vmatprep.subr.mxu0 0.0
      %536 = vmatpush1.msra.mxu0 0.0
      %537 = vmatprep.subr.mxu0 0.0
      %538 = vmatpush1.msra.mxu0 0.0
      %539 = vmatprep.subr.mxu0 0.0
      %540 = vmatpush1.msra.mxu0 0.0
      %541 = vmatprep.subr.mxu0 0.0
      %542 = vmatpush1.msra.mxu0 0.0
      %543 = vmatprep.subr.mxu0 0.0
      %544 = vmatpush1.msra.mxu0 0.0
      %545 = vmatprep.subr.mxu0 0.0
      %546 = vmatpush1.msra.mxu0 0.0
      %547 = vmatprep.subr.mxu0 0.0
      %548 = vmatpush1.msra.mxu0 0.0
      %549 = vmatprep.subr.mxu0 0.0
      %550 = vmatpush1.msra.mxu0 0.0
      %551 = vmatprep.subr.mxu0 0.0
      %552 = vmatpush1.msra.mxu0 0.0
      %553 = vmatprep.subr.mxu0 0.0
      %554 = vmatpush1.msra.mxu0 0.0
      %555 = vmatprep.subr.mxu0 0.0
      %556 = vmatpush1.msra.mxu0 0.0
      %557 = vmatprep.subr.mxu0 0.0
      %558 = vmatpush1.msra.mxu0 0.0
      %559 = vmatprep.subr.mxu0 0.0
      %560 = vmatpush1.msra.mxu0 0.0
      %561 = vmatprep.subr.mxu0 0.0
      %562 = vmatpush1.msra.mxu0 0.0
      %563 = vmatprep.subr.mxu0 0.0
      %564 = vmatpush1.msra.mxu0 0.0
      %565 = vmatprep.mubr.f32.mxu0 0.0
      %566 = vmatmul.mubr.f32.gmra.mrb[0].mxu0 %v490
      %v567 = vpop.f32.mrb[0].mxu0
      %v568 = vadd.f32 %v471, %v567
      %v569 = vpop.f32.mrb[0].mxu0
      %570 = vmatprep.mubr.f32.mxu0 0.0
      %571 = vmatmul.mubr.f32.gmra.mrb[0].mxu0 %v493
      %v572 = vpop.f32.mrb[0].mxu0
      %v573 = vadd.f32 %v476, %v572
      %v574 = vpop.f32.mrb[0].mxu0
      %575 = vmatprep.mubr.f32.mxu0 0.0
      %576 = vmatmul.mubr.f32.gmra.mrb[0].mxu0 %v496
      %v577 = vpop.f32.mrb[0].mxu0
      %v578 = vadd.f32 %v481, %v577
      %v579 = vpop.f32.mrb[0].mxu0
      %580 = vmatprep.mubr.f32.mxu0 0.0
      %581 = vmatmul.mubr.f32.gmra.mrb[0].mxu0 %v499
      %v582 = vpop.f32.mrb[0].mxu0
      %v583 = vadd.f32 %v486, %v582
      %v584 = vpop.f32.mrb[0].mxu0
      %585 = vdwg.mxu0
      %s586 = scalar_lea.vmem %s2, 128
      %v587 = vld [vmem:[%s586] sm:$0xff]
      %v588 = vld [vmem:[%s586 + $0x8] sm:$0xff]
      %v589 = vld [vmem:[%s586 + $0x10] sm:$0xff]
      %v590 = vld [vmem:[%s586 + $0x18] sm:$0xff]
      %v591 = vld [vmem:[%s586 + $0x20] sm:$0xff]
      %v592 = vld [vmem:[%s586 + $0x28] sm:$0xff]
      %v593 = vld [vmem:[%s586 + $0x30] sm:$0xff]
      %v594 = vld [vmem:[%s586 + $0x38] sm:$0xff]
      %v596 = vsel %vm391, %v356, 0
      %v599 = vsel %vm391, %v361, 0
      %v602 = vsel %vm391, %v366, 0
      %v605 = vsel %vm391, %v371, 0
      %607 = vmatprep.subr.mxu0 0.0
      %608 = vmatpush1.msra.mxu0 %v587
      %609 = vmatprep.subr.mxu0 0.0
      %610 = vmatpush1.msra.mxu0 %v588
      %611 = vmatprep.subr.mxu0 0.0
      %612 = vmatpush1.msra.mxu0 %v589
      %613 = vmatprep.subr.mxu0 0.0
      %614 = vmatpush1.msra.mxu0 %v590
      %615 = vmatprep.subr.mxu0 0.0
      %616 = vmatpush1.msra.mxu0 %v591
      %617 = vmatprep.subr.mxu0 0.0
      %618 = vmatpush1.msra.mxu0 %v592
      %619 = vmatprep.subr.mxu0 0.0
      %620 = vmatpush1.msra.mxu0 %v593
      %621 = vmatprep.subr.mxu0 0.0
      %622 = vmatpush1.msra.mxu0 %v594
      %623 = vmatprep.subr.mxu0 0.0
      %624 = vmatpush1.msra.mxu0 0.0
      %625 = vmatprep.subr.mxu0 0.0
      %626 = vmatpush1.msra.mxu0 0.0
      %627 = vmatprep.subr.mxu0 0.0
      %628 = vmatpush1.msra.mxu0 0.0
      %629 = vmatprep.subr.mxu0 0.0
      %630 = vmatpush1.msra.mxu0 0.0
      %631 = vmatprep.subr.mxu0 0.0
      %632 = vmatpush1.msra.mxu0 0.0
      %633 = vmatprep.subr.mxu0 0.0
      %634 = vmatpush1.msra.mxu0 0.0
      %635 = vmatprep.subr.mxu0 0.0
      %636 = vmatpush1.msra.mxu0 0.0
      %637 = vmatprep.subr.mxu0 0.0
      %638 = vmatpush1.msra.mxu0 0.0
      %639 = vmatprep.subr.mxu0 0.0
      %640 = vmatpush1.msra.mxu0 0.0
      %641 = vmatprep.subr.mxu0 0.0
      %642 = vmatpush1.msra.mxu0 0.0
      %643 = vmatprep.subr.mxu0 0.0
      %644 = vmatpush1.msra.mxu0 0.0
      %645 = vmatprep.subr.mxu0 0.0
      %646 = vmatpush1.msra.mxu0 0.0
      %647 = vmatprep.subr.mxu0 0.0
      %648 = vmatpush1.msra.mxu0 0.0
      %649 = vmatprep.subr.mxu0 0.0
      %650 = vmatpush1.msra.mxu0 0.0
      %651 = vmatprep.subr.mxu0 0.0
      %652 = vmatpush1.msra.mxu0 0.0
      %653 = vmatprep.subr.mxu0 0.0
      %654 = vmatpush1.msra.mxu0 0.0
      %655 = vmatprep.subr.mxu0 0.0
      %656 = vmatpush1.msra.mxu0 0.0
      %657 = vmatprep.subr.mxu0 0.0
      %658 = vmatpush1.msra.mxu0 0.0
      %659 = vmatprep.subr.mxu0 0.0
      %660 = vmatpush1.msra.mxu0 0.0
      %661 = vmatprep.subr.mxu0 0.0
      %662 = vmatpush1.msra.mxu0 0.0
      %663 = vmatprep.subr.mxu0 0.0
      %664 = vmatpush1.msra.mxu0 0.0
      %665 = vmatprep.subr.mxu0 0.0
      %666 = vmatpush1.msra.mxu0 0.0
      %667 = vmatprep.subr.mxu0 0.0
      %668 = vmatpush1.msra.mxu0 0.0
      %669 = vmatprep.subr.mxu0 0.0
      %670 = vmatpush1.msra.mxu0 0.0
      %671 = vmatprep.mubr.f32.mxu0 0.0
      %672 = vmatmul.mubr.f32.gmra.mrb[0].mxu0 %v596
      %v673 = vpop.f32.mrb[0].mxu0
      %v674 = vadd.f32 0.0, %v673
      %v675 = vpop.f32.mrb[0].mxu0
      %676 = vmatprep.mubr.f32.mxu0 0.0
      %677 = vmatmul.mubr.f32.gmra.mrb[0].mxu0 %v599
      %v678 = vpop.f32.mrb[0].mxu0
      %v679 = vadd.f32 0.0, %v678
      %v680 = vpop.f32.mrb[0].mxu0
      %681 = vmatprep.mubr.f32.mxu0 0.0
      %682 = vmatmul.mubr.f32.gmra.mrb[0].mxu0 %v602
      %v683 = vpop.f32.mrb[0].mxu0
      %v684 = vadd.f32 0.0, %v683
      %v685 = vpop.f32.mrb[0].mxu0
      %686 = vmatprep.mubr.f32.mxu0 0.0
      %687 = vmatmul.mubr.f32.gmra.mrb[0].mxu0 %v605
      %v688 = vpop.f32.mrb[0].mxu0
      %v689 = vadd.f32 0.0, %v688
      %v690 = vpop.f32.mrb[0].mxu0
      %691 = vdwg.mxu0
      %v692 = vadd.f32 %v568, %v674
      %v693 = vadd.f32 %v573, %v679
      %v694 = vadd.f32 %v578, %v684
      %v695 = vadd.f32 %v583, %v689
      %v696 = vld [vmem:[%s3] sm:$0x1]
      %v698 = vlaneseq
      %v699 = vshrl.u32 %v698, 7
      %v700 = vsub.s32 0, %v699
      %v701 = vrot.slane %v696, %v700
      %v703 = vadd.f32 %v692, %v701
      %v704 = vadd.f32 %v693, %v701
      %v705 = vadd.f32 %v694, %v701
      %v706 = vadd.f32 %v695, %v701
      %707 = vst [vmem:[%s197] sm:$0xff] %v703
      %708 = vst [vmem:[%s197 + $0x8] sm:$0xff] %v704
      %709 = vst [vmem:[%s197 + $0x10] sm:$0xff] %v705
      %710 = vst [vmem:[%s197 + $0x18] sm:$0xff] %v706
      %p711 = scmp.lt.s32.totalorder %s15, 1
      %s712 = scalar_select %p711, %s15, 1
      %s713 = smul.addr %s712, 4
      %s714 = smul.addr %s713, 8
      %s715 = scalar_lea.vmem %s4, %s714
      // Predicated region
      $region37: #{upsample_forward.1} parent=35 // pred_check
        %p716 = pneg %p122
      $region38: #{upsample_forward.1} parent=35 // pred_check_branch
        %718 = sbr.rel (%p716) target = $region40
      $region39: #{upsample_forward.1} parent=35 // pred_region
        _
      $region40: #{upsample_forward.1} parent=35 // pred_fallthru
        _
    $region36: #{upsample_forward.1} parent=5 // pred_fallthru
      _
    %p719 = scmp.le.s32.totalorder 2, %s10
    // Predicated region
    $region41: #{upsample_forward.1} parent=5 // pred_check
      %p720 = pneg %p719
    $region42: #{upsample_forward.1} parent=5 // pred_check_branch
      %722 = sbr.rel (%p720) target = $region44
    $region43: #{upsample_forward.1} parent=5 // pred_region
      %s723 = ssub.s32 %s10, 2
      // Predicated region
      $region45: #{upsample_forward.1} parent=43 // pred_check
        %p724 = pneg %p128
      $region46: #{upsample_forward.1} parent=43 // pred_check_branch
        %726 = sbr.rel (%p724) target = $region48
      $region47: #{upsample_forward.1} parent=43 // pred_region
        %p727 = scmp.lt.s32.totalorder %s16, 1
        %s728 = scalar_select %p727, %s16, 1
        %s729 = smul.addr %s728, 4
        %s730 = smul.addr %s729, 8
        %s731 = scalar_lea.vmem %s4, %s730
      $region48: #{upsample_forward.1} parent=43 // pred_fallthru
        _
    $region44: #{upsample_forward.1} parent=5 // pred_fallthru
      _
  $region6: #{upsample_forward.1} parent=0 // loop_footer
    %s14 = sadd.s32 1, %s10
  $region7: #{upsample_forward.1} parent=0 // loop_footer_branch
    %9 = sbr.rel target = $region3
  $region8: #{upsample_forward.1} parent=0 // loop_exit
    _

</llo_original>
